<compile_context>
chip_gen: v7x
topology: tpu7x:2x2x1
jax: 0.10.0
libtpu: 0.0.40
codegen_flags: <defaults>
</compile_context>

<pallas_src>
import jax
import jax.numpy as jnp
from jax.experimental import pallas as pl
from jax.experimental.pallas import tpu as pltpu


# ----------------------------------------------------------------------------
# Kernel factory
# ----------------------------------------------------------------------------
def _make_doubleq_kernel(n_hidden, fused, width):
    """Fused double-Q MLP kernel.

    Ref order: s, a, w_s, w_a, b_stack, <hidden/head weights...>, q_out
      fused=True : hidden W_i (2w,2w) * n_hidden, then W_head (2w,2)
      fused=False: (W1_i, W2_i) (w,w) pairs * n_hidden, then Wh1 (w,2), Wh2 (w,2)
    q_out is written transposed with shape (2, tb) for lane-dense stores.
    """

    def kernel(s_ref, a_ref, ws_ref, wa_ref, b_ref, *refs):
        q_ref = refs[-1]
        mats = refs[:-1]
        cdt = ws_ref.dtype  # MXU input dtype (bf16 by default, f32 accumulate)

        # Layer 1: torch.cat([s, a]) folded into two matmuls. The bf16 cast of
        # the activations happens here (VPU slack under the MXU) instead of as
        # a separate wrapper-side XLA pass over HBM.
        h = (
            jnp.dot(s_ref[...].astype(cdt), ws_ref[...],
                    preferred_element_type=jnp.float32)
            + jnp.dot(a_ref[...].astype(cdt), wa_ref[...],
                      preferred_element_type=jnp.float32)
            + b_ref[0:1, :]
        )
        h = jnp.maximum(h, 0.0)  # f32 ReLU (v5e-friendly)

        if fused:
            # Both nets as one block-diagonal chain (2*width fits one MXU tile).
            for i in range(n_hidden):
                h = (
                    jnp.dot(h.astype(cdt), mats[i][...],
                            preferred_element_type=jnp.float32)
                    + b_ref[i + 1:i + 2, :]
                )
                h = jnp.maximum(h, 0.0)
            q = (
                jnp.dot(h.astype(cdt), mats[n_hidden][...],
                        preferred_element_type=jnp.float32)
                + b_ref[n_hidden + 1:n_hidden + 2, 0:2]
            )
        else:
            # Wide nets: two real (w,w) chains — no zero-block MXU passes on
            # v5e's 128x128 array, half the resident weight bytes on v7x.
            h1 = h[:, :width]
            h2 = h[:, width:]
            for i in range(n_hidden):
                b_row = b_ref[i + 1:i + 2, :]
                h1 = jnp.maximum(
                    jnp.dot(h1.astype(cdt), mats[2 * i][...],
                            preferred_element_type=jnp.float32)
                    + b_row[:, :width], 0.0)
                h2 = jnp.maximum(
                    jnp.dot(h2.astype(cdt), mats[2 * i + 1][...],
                            preferred_element_type=jnp.float32)
                    + b_row[:, width:], 0.0)
            # Heads pre-packed as (w, 2): net1 in column 0, net2 in column 1,
            # so the two products sum directly into the lane-packed result.
            q = (
                jnp.dot(h1.astype(cdt), mats[2 * n_hidden][...],
                        preferred_element_type=jnp.float32)
                + jnp.dot(h2.astype(cdt), mats[2 * n_hidden + 1][...],
                          preferred_element_type=jnp.float32)
                + b_ref[n_hidden + 1:n_hidden + 2, 0:2]
            )

        # Lane-dense store: (2, tb) transposed output -> dense 128-lane vst's
        # instead of ~tb/8 masked 2-lane stores. Tiny transpose -> XLU slot.
        q_ref[...] = jnp.transpose(q).astype(q_ref.dtype)

    return kernel


# ----------------------------------------------------------------------------
# Parameter packing: fuse net1 + net2 into one widened MLP.  Call ONCE per
# parameter update (hoisted out of the forward path).
# ----------------------------------------------------------------------------
def pack_doubleq_params(params1, params2, state_dim, *, fuse_hidden=None,
                        weight_dtype=jnp.bfloat16):
    """Pack both Q-nets.

    weight_dtype=bfloat16 feeds the MXU in bf16 with f32 accumulation — an
    explicit deviation from f32 torch numerics (~1e-3 relative error, fine for
    RL Q-values).  Pass jnp.float32 for exact-dtype matmuls.
    """
    n_layers = len(params1)
    assert len(params2) == n_layers
    assert n_layers >= 2, "DoubleQMLP kernel requires depth >= 1 (layer1 + head)"
    width = params1[0][0].shape[1]
    n_hidden = n_layers - 2
    if fuse_hidden is None:
        # Block-diagonal fusion is a guaranteed win when 2*width fits one MXU
        # weight tile on every generation (v5e MXU is 128 wide). On v6e/v7x you
        # may pass fuse_hidden=True up to width=128 (256-wide MXU).
        fuse_hidden = (2 * width) <= 128
    two_w = 2 * width
    wdt = weight_dtype

    # Layer 1: concat outputs of both nets, split rows into state/action parts.
    w1 = jnp.concatenate([params1[0][0], params2[0][0]], axis=1)   # (in, 2w)
    w_s = w1[:state_dim].astype(wdt)
    w_a = w1[state_dim:].astype(wdt)
    action_dim = int(w_a.shape[0])

    # Stacked biases: one (n_layers, 2w) f32 array (last row = heads, padded).
    b_rows = [jnp.concatenate([params1[0][1], params2[0][1]], axis=0)]
    for i in range(1, n_layers - 1):
        b_rows.append(jnp.concatenate([params1[i][1], params2[i][1]], axis=0))
    head_b = jnp.concatenate([params1[-1][1], params2[-1][1]], axis=0)   # (2,)
    b_rows.append(jnp.pad(head_b, (0, two_w - head_b.shape[0])))
    b_stack = jnp.stack(b_rows, axis=0).astype(jnp.float32)

    mats = []
    flops_per_row = 2 * (state_dim + action_dim) * two_w
    if fuse_hidden:
        for i in range(1, n_layers - 1):
            wA, wB = params1[i][0], params2[i][0]
            w = jnp.zeros((two_w, two_w), jnp.float32)
            w = w.at[:width, :width].set(wA).at[width:, width:].set(wB)
            mats.append(w.astype(wdt))
            flops_per_row += 2 * two_w * two_w
        w_head = jnp.zeros((two_w, 2), jnp.float32)
        w_head = w_head.at[:width, 0:1].set(params1[-1][0])
        w_head = w_head.at[width:, 1:2].set(params2[-1][0])
        mats.append(w_head.astype(wdt))
        flops_per_row += 2 * two_w * 2
    else:
        for i in range(1, n_layers - 1):
            mats.append(params1[i][0].astype(wdt))
            mats.append(params2[i][0].astype(wdt))
            flops_per_row += 2 * 2 * width * width
        mats.append(jnp.pad(params1[-1][0], ((0, 0), (0, 1))).astype(wdt))  # (w,2)
        mats.append(jnp.pad(params2[-1][0], ((0, 0), (1, 0))).astype(wdt))  # (w,2)
        flops_per_row += 2 * 2 * width * 2

    return dict(w_s=w_s, w_a=w_a, b_stack=b_stack, mats=mats,
                fused=bool(fuse_hidden), width=int(width), n_hidden=int(n_hidden),
                state_dim=int(state_dim), action_dim=int(action_dim),
                flops_per_row=int(flops_per_row))


# ----------------------------------------------------------------------------
# Wrapper
# ----------------------------------------------------------------------------
def _round_up(x, m):
    return ((x + m - 1) // m) * m


def _choose_batch_tiling(batch, width, max_batch_tile):
    """(tile_rows, padded_batch, n_grid).

    Per-grid-step overhead is ~0.35 us, so tiles are as large as a few MiB of
    f32 activations allow (this kernel is grid-overhead bound at small width).
    For batch > 256 force n_grid >= 2 so both v7x TensorCores get work.
    """
    act_cap = max(256, (4 << 20) // max(1, 8 * width))   # ~4 MiB of (tb, 2w) f32
    max_tile = max(128, min(int(max_batch_tile), _round_up(act_cap, 128)))
    if batch <= 256:
        tb = _round_up(batch, 8)     # sublane-align; blocks cover full arrays
        return tb, tb, 1
    n_grid = max(2, pl.cdiv(batch, max_tile))
    tb = _round_up(pl.cdiv(batch, n_grid), 128)          # lane-dense out tiles
    n_grid = pl.cdiv(batch, tb)
    return tb, tb * n_grid, n_grid


def double_q_mlp_forward(s, a, packed, *, max_batch_tile=2048):
    """s: (B, *state_shape), a: (B, *action_shape). Returns (q1, q2), (B,1) f32."""
    B = s.shape[0]
    s2 = s.reshape(B, -1)
    a2 = a.reshape(B, -1)
    assert s2.shape[1] == packed["state_dim"], "state_dim mismatch with packed params"
    assert a2.shape[1] == packed["action_dim"], "action_dim mismatch with packed params"
    width = packed["width"]

    tb, padded_b, n_grid = _choose_batch_tiling(B, width, max_batch_tile)
    if padded_b != B:
        # TODO(synk): masking the ragged last tile in-kernel would avoid this
        # (cheap) pad pass entirely.
        s2 = jnp.pad(s2, ((0, padded_b - B), (0, 0)))
        a2 = jnp.pad(a2, ((0, padded_b - B), (0, 0)))

    flat_inputs = [s2, a2, packed["w_s"], packed["w_a"], packed["b_stack"]] \
        + list(packed["mats"])

    # Resident (constant block index) weights: single-buffer them once they are
    # big enough for double-buffering to matter (v7x: 64 MiB physical VMEM).
    resident_bytes = sum(int(x.size) * x.dtype.itemsize for x in flat_inputs[2:])
    resident_kwargs = {}
    if resident_bytes > (8 << 20):
        resident_kwargs = dict(pipeline_mode=pl.Buffered(1))

    def resident(arr):
        return pl.BlockSpec(arr.shape, lambda i: (0, 0), **resident_kwargs)

    in_specs = [
        pl.BlockSpec((tb, packed["state_dim"]), lambda i: (i, 0)),
        pl.BlockSpec((tb, packed["action_dim"]), lambda i: (i, 0)),
    ] + [resident(x) for x in flat_inputs[2:]]

    out_specs = pl.BlockSpec((2, tb), lambda i: (0, i))
    out_shape = jax.ShapeDtypeStruct((2, padded_b), jnp.float32)

    # Explicit VMEM budget: resident weights x buffer count + streamed tiles +
    # activation working set, clamped to [32 MiB, 128 MiB].
    buffers = 1 if resident_kwargs else 2
    stream_bytes = 2 * tb * (packed["state_dim"] + packed["action_dim"] + 2) * 4
    act_bytes = 4 * tb * 2 * width * 4
    vmem_bytes = buffers * resident_bytes + stream_bytes + act_bytes + (4 << 20)
    vmem_bytes = int(min(max(vmem_bytes, 32 << 20), 128 << 20))

    flops = int(padded_b) * packed["flops_per_row"]
    bytes_accessed = int(
        sum(int(x.size) * x.dtype.itemsize for x in flat_inputs) + 2 * padded_b * 4)

    kernel = _make_doubleq_kernel(packed["n_hidden"], packed["fused"], width)

    q = pl.pallas_call(
        kernel,
        grid=(n_grid,),
        in_specs=in_specs,
        out_specs=out_specs,
        out_shape=out_shape,
        compiler_params=pltpu.CompilerParams(
            dimension_semantics=("parallel",),
            vmem_limit_bytes=vmem_bytes,
        ),
        cost_estimate=pl.CostEstimate(
            flops=flops, transcendentals=0, bytes_accessed=bytes_accessed),
    )(*flat_inputs)

    q1 = q[0, :B].reshape(B, 1)
    q2 = q[1, :B].reshape(B, 1)
    return q1, q2


# ----------------------------------------------------------------------------
# Param init (mimics torch.nn.Linear default: uniform +-1/sqrt(fan_in))
# ----------------------------------------------------------------------------
def init_mlp_params(key, input_dim, output_dim, width, depth):
    dims = [input_dim] + [width] * depth + [output_dim]
    params = []
    for i in range(len(dims) - 1):
        key, kw, kb = jax.random.split(key, 3)
        bound = 1.0 / jnp.sqrt(dims[i])
        w = jax.random.uniform(kw, (dims[i], dims[i + 1]), jnp.float32, -bound, bound)
        b = jax.random.uniform(kb, (dims[i + 1],), jnp.float32, -bound, bound)
        params.append((w, b))
    return params, key


if __name__ == "__main__":
    key = jax.random.PRNGKey(0)

    def run_case(key, batch, state_shape, action_dim, width, depth, name):
        state_dim = 1
        for d in state_shape:
            state_dim *= d
        in_dim = state_dim + action_dim

        key, ks, ka = jax.random.split(key, 3)
        s = jax.random.normal(ks, (batch,) + state_shape, jnp.float32)
        a = jax.random.normal(ka, (batch, action_dim), jnp.float32)
        params1, key = init_mlp_params(key, in_dim, 1, width, depth)
        params2, key = init_mlp_params(key, in_dim, 1, width, depth)

        packed = pack_doubleq_params(params1, params2, state_dim)  # pack once
        q1, q2 = double_q_mlp_forward(s, a, packed)
        jax.block_until_ready((q1, q2))

        # Pure-JAX reference with the same bf16-matmul / f32-accumulate numerics.
        def ref_mlp(x, ps):
            h = x
            for i, (w, b) in enumerate(ps):
                h = jnp.dot(h.astype(jnp.bfloat16), w.astype(jnp.bfloat16),
                            preferred_element_type=jnp.float32) + b
                if i < len(ps) - 1:
                    h = jnp.maximum(h, 0.0)
            return h

        x = jnp.concatenate([s.reshape(batch, -1), a.reshape(batch, -1)], axis=-1)
        q1_ref = ref_mlp(x, params1)
        q2_ref = ref_mlp(x, params2)

        assert q1.shape == (batch, 1) and q2.shape == (batch, 1)
        assert jnp.allclose(q1, q1_ref, atol=5e-3, rtol=5e-3), f"{name}: q1 mismatch"
        assert jnp.allclose(q2, q2_ref, atol=5e-3, rtol=5e-3), f"{name}: q2 mismatch"
        return key

    # Small fused case: width<=64 -> block-diagonal fusion, single grid tile.
    key = run_case(key, batch=8, state_shape=(4, 4), action_dim=8,
                   width=32, depth=2, name="fused")
    # Wider case: 2*width>128 -> split hidden chains, 2 batch tiles on the
    # "parallel" grid axis (feeds both v7x TensorCores), ragged batch padding.
    key = run_case(key, batch=300, state_shape=(4, 4), action_dim=8,
                   width=128, depth=2, name="split")

    print("KERNEL_OK")
</pallas_src>

<mosaic_0001>
module attributes {stable_mosaic.version = 11 : i64} {
  func.func @kernel(%arg0: i32, %arg1: memref<8x16xf32, #tpu.memory_space<vmem>>, %arg2: memref<8x8xf32, #tpu.memory_space<vmem>>, %arg3: memref<16x64xbf16, #tpu.memory_space<vmem>>, %arg4: memref<8x64xbf16, #tpu.memory_space<vmem>>, %arg5: memref<3x64xf32, #tpu.memory_space<vmem>>, %arg6: memref<64x64xbf16, #tpu.memory_space<vmem>>, %arg7: memref<64x2xbf16, #tpu.memory_space<vmem>>, %arg8: memref<2x8xf32, #tpu.memory_space<vmem>>) attributes {dimension_semantics = [#tpu.dimension_semantics<parallel>], iteration_bounds = array<i64: 1>, scalar_prefetch = 0 : i64, scratch_operands = 0 : i64, tpu.core_type = #tpu.core_type<tc>, window_params = [{transform_indices = @transform_0, window_bounds = array<i64: 8, 16>}, {transform_indices = @transform_1, window_bounds = array<i64: 8, 8>}, {pipeline_mode = #tpu.pipeline_mode<synchronous>, transform_indices = @transform_2, window_bounds = array<i64: 16, 64>}, {pipeline_mode = #tpu.pipeline_mode<synchronous>, transform_indices = @transform_3, window_bounds = array<i64: 8, 64>}, {pipeline_mode = #tpu.pipeline_mode<synchronous>, transform_indices = @transform_4, window_bounds = array<i64: 3, 64>}, {pipeline_mode = #tpu.pipeline_mode<synchronous>, transform_indices = @transform_5, window_bounds = array<i64: 64, 64>}, {pipeline_mode = #tpu.pipeline_mode<synchronous>, transform_indices = @transform_6, window_bounds = array<i64: 64, 2>}, {transform_indices = @transform_7, window_bounds = array<i64: 2, 8>}]} {
    %c0 = arith.constant 0 : index
    %c0_0 = arith.constant 0 : index
    %0 = vector.load %arg1[%c0, %c0_0] : memref<8x16xf32, #tpu.memory_space<vmem>>, vector<8x16xf32>
    %1 = arith.truncf %0 : vector<8x16xf32> to vector<8x16xbf16>
    %c0_1 = arith.constant 0 : index
    %c0_2 = arith.constant 0 : index
    %2 = vector.load %arg3[%c0_1, %c0_2] : memref<16x64xbf16, #tpu.memory_space<vmem>>, vector<16x64xbf16>
    %cst = arith.constant dense<0.000000e+00> : vector<8x64xf32>
    %3 = tpu.matmul %1, %2, %cst {dimension_numbers = #tpu.dot_dimension_numbers<[1], [0], [0], [1], [0, 0, 1, 1], [], []>} : vector<8x16xbf16>, vector<16x64xbf16>, vector<8x64xf32> -> vector<8x64xf32>
    %c0_3 = arith.constant 0 : index
    %c0_4 = arith.constant 0 : index
    %4 = vector.load %arg2[%c0_3, %c0_4] : memref<8x8xf32, #tpu.memory_space<vmem>>, vector<8x8xf32>
    %5 = arith.truncf %4 : vector<8x8xf32> to vector<8x8xbf16>
    %c0_5 = arith.constant 0 : index
    %c0_6 = arith.constant 0 : index
    %6 = vector.load %arg4[%c0_5, %c0_6] : memref<8x64xbf16, #tpu.memory_space<vmem>>, vector<8x64xbf16>
    %cst_7 = arith.constant dense<0.000000e+00> : vector<8x64xf32>
    %7 = tpu.matmul %5, %6, %cst_7 {dimension_numbers = #tpu.dot_dimension_numbers<[1], [0], [0], [1], [0, 0, 1, 1], [], []>} : vector<8x8xbf16>, vector<8x64xbf16>, vector<8x64xf32> -> vector<8x64xf32>
    %8 = arith.addf %3, %7 : vector<8x64xf32>
    %c0_8 = arith.constant 0 : index
    %c0_9 = arith.constant 0 : index
    %9 = vector.load %arg5[%c0_8, %c0_9] : memref<3x64xf32, #tpu.memory_space<vmem>>, vector<1x64xf32>
    %10 = vector.broadcast %9 : vector<1x64xf32> to vector<8x64xf32>
    %11 = arith.addf %8, %10 : vector<8x64xf32>
    %cst_10 = arith.constant 0.000000e+00 : f32
    %12 = vector.broadcast %cst_10 : f32 to vector<8x64xf32>
    %13 = arith.maximumf %11, %12 : vector<8x64xf32>
    %14 = arith.truncf %13 : vector<8x64xf32> to vector<8x64xbf16>
    %c0_11 = arith.constant 0 : index
    %c0_12 = arith.constant 0 : index
    %15 = vector.load %arg6[%c0_11, %c0_12] : memref<64x64xbf16, #tpu.memory_space<vmem>>, vector<64x64xbf16>
    %cst_13 = arith.constant dense<0.000000e+00> : vector<8x64xf32>
    %16 = tpu.matmul %14, %15, %cst_13 {dimension_numbers = #tpu.dot_dimension_numbers<[1], [0], [0], [1], [0, 0, 1, 1], [], []>} : vector<8x64xbf16>, vector<64x64xbf16>, vector<8x64xf32> -> vector<8x64xf32>
    %c1 = arith.constant 1 : index
    %c0_14 = arith.constant 0 : index
    %17 = vector.load %arg5[%c1, %c0_14] : memref<3x64xf32, #tpu.memory_space<vmem>>, vector<1x64xf32>
    %18 = vector.broadcast %17 : vector<1x64xf32> to vector<8x64xf32>
    %19 = arith.addf %16, %18 : vector<8x64xf32>
    %cst_15 = arith.constant 0.000000e+00 : f32
    %20 = vector.broadcast %cst_15 : f32 to vector<8x64xf32>
    %21 = arith.maximumf %19, %20 : vector<8x64xf32>
    %22 = arith.truncf %21 : vector<8x64xf32> to vector<8x64xbf16>
    %c0_16 = arith.constant 0 : index
    %c0_17 = arith.constant 0 : index
    %23 = vector.load %arg7[%c0_16, %c0_17] : memref<64x2xbf16, #tpu.memory_space<vmem>>, vector<64x2xbf16>
    %cst_18 = arith.constant dense<0.000000e+00> : vector<8x2xf32>
    %24 = tpu.matmul %22, %23, %cst_18 {dimension_numbers = #tpu.dot_dimension_numbers<[1], [0], [0], [1], [0, 0, 1, 1], [], []>} : vector<8x64xbf16>, vector<64x2xbf16>, vector<8x2xf32> -> vector<8x2xf32>
    %c2 = arith.constant 2 : index
    %c0_19 = arith.constant 0 : index
    %25 = vector.load %arg5[%c2, %c0_19] : memref<3x64xf32, #tpu.memory_space<vmem>>, vector<1x2xf32>
    %26 = vector.broadcast %25 : vector<1x2xf32> to vector<8x2xf32>
    %27 = arith.addf %24, %26 : vector<8x2xf32>
    %28 = tpu.transpose %27, [1, 0] : vector<8x2xf32> -> vector<2x8xf32>
    %c0_20 = arith.constant 0 : index
    %c0_21 = arith.constant 0 : index
    %29 = vector.load %arg8[%c0_20, %c0_21] : memref<2x8xf32, #tpu.memory_space<vmem>>, vector<2x8xf32>
    tpu.vector_store %arg8[%c0_20, %c0_21], %28 {strides = array<i32>} : memref<2x8xf32, #tpu.memory_space<vmem>>, vector<2x8xf32>,
    return
  }
  func.func @transform_0(%arg0: i32) -> (i32, i32) {
    %c0_i32 = arith.constant 0 : i32
    %c0_i32_0 = arith.constant 0 : i32
    return %arg0, %c0_i32 : i32, i32
  }
  func.func @transform_1(%arg0: i32) -> (i32, i32) {
    %c0_i32 = arith.constant 0 : i32
    %c0_i32_0 = arith.constant 0 : i32
    return %arg0, %c0_i32 : i32, i32
  }
  func.func @transform_2(%arg0: i32) -> (i32, i32) {
    %c0_i32 = arith.constant 0 : i32
    %c0_i32_0 = arith.constant 0 : i32
    %c0_i32_1 = arith.constant 0 : i32
    return %c0_i32, %c0_i32_0 : i32, i32
  }
  func.func @transform_3(%arg0: i32) -> (i32, i32) {
    %c0_i32 = arith.constant 0 : i32
    %c0_i32_0 = arith.constant 0 : i32
    %c0_i32_1 = arith.constant 0 : i32
    return %c0_i32, %c0_i32_0 : i32, i32
  }
  func.func @transform_4(%arg0: i32) -> (i32, i32) {
    %c0_i32 = arith.constant 0 : i32
    %c0_i32_0 = arith.constant 0 : i32
    %c0_i32_1 = arith.constant 0 : i32
    return %c0_i32, %c0_i32_0 : i32, i32
  }
  func.func @transform_5(%arg0: i32) -> (i32, i32) {
    %c0_i32 = arith.constant 0 : i32
    %c0_i32_0 = arith.constant 0 : i32
    %c0_i32_1 = arith.constant 0 : i32
    return %c0_i32, %c0_i32_0 : i32, i32
  }
  func.func @transform_6(%arg0: i32) -> (i32, i32) {
    %c0_i32 = arith.constant 0 : i32
    %c0_i32_0 = arith.constant 0 : i32
    %c0_i32_1 = arith.constant 0 : i32
    return %c0_i32, %c0_i32_0 : i32, i32
  }
  func.func @transform_7(%arg0: i32) -> (i32, i32) {
    %c0_i32 = arith.constant 0 : i32
    %c0_i32_0 = arith.constant 0 : i32
    return %c0_i32, %arg0 : i32, i32
  }
}

</mosaic_0001>

<llo_original>
// kernel: tpu_custom_call.1
$region0: #{tpu_custom_call.1}
  #allocation0 [shape = 'u32[]', space=smem, size = 0x4, offset = 0x4, fixed_abs, tag = 'smem constant byte address 0x4 - core index']
  #allocation1 [shape = 'u32[144,128]{1,0:T(1,128)}', space=vmem, size = 0x12000, scoped, tag = 'internal scratch']
  %s0 = inlined_call_operand.vmem [shape: f32[8,16], index: 0, kind: input, shape index: {}]
  %s1 = inlined_call_operand.vmem [shape: f32[8,8], index: 1, kind: input, shape index: {}]
  %s2 = inlined_call_operand.hbm [shape: bf16[16,64], index: 2, kind: input, shape index: {}]
  %s3 = inlined_call_operand.hbm [shape: bf16[8,64], index: 3, kind: input, shape index: {}]
  %s4 = inlined_call_operand.hbm [shape: f32[3,64], index: 4, kind: input, shape index: {}]
  %s5 = inlined_call_operand.vmem [shape: bf16[64,64], index: 5, kind: input, shape index: {}]
  %s6 = inlined_call_operand.vmem [shape: bf16[64,2], index: 6, kind: input, shape index: {}]
  %s7 = inlined_call_operand.hbm [shape: f32[2,8], index: 7, kind: output, shape index: {}]
  %s8 = sld [smem:[#allocation0]]
  $region50: #{tpu_custom_call.1} parent=0
    _
  %s10 = ssub.s32 1, %s8
  %s11 = scalar_select 0, %s10, %s8
  $region1: #{tpu_custom_call.1} parent=0
    #allocation2 [shape = 'u8[4096]{0}', space=vmem, size = 0x1000, scoped, tag = 'input window, operand 2, single buffered']
    #allocation3 [shape = 's32[1]{0}', space=sflag, size = 0x4, scoped, tag = 'scoped memory for tpu_custom_call.1']
    #allocation4 [shape = 's32[1]{0}', space=sflag, size = 0x4, scoped, tag = 'scoped memory for tpu_custom_call.1']
    #allocation5 [shape = 'u8[2048]{0}', space=vmem, size = 0x800, scoped, tag = 'input window, operand 3, single buffered']
    #allocation6 [shape = 's32[1]{0}', space=sflag, size = 0x4, scoped, tag = 'scoped memory for tpu_custom_call.1']
    #allocation7 [shape = 'u8[2048]{0}', space=vmem, size = 0x800, scoped, tag = 'input window, operand 4, single buffered']
    #allocation8 [shape = 'u8[1024]{0}', space=vmem, size = 0x400, scoped, tag = 'output window, operand 0, single buffered']
    %12 = vsyncpa [#allocation3], 0
    %13 = vsyncpa [#allocation6], 0
    %14 = vsyncpa [#allocation4], 0
    // Predicated region
    $region2: #{tpu_custom_call.1} parent=1 // pred_check
      _
    $region3: #{tpu_custom_call.1} parent=1 // pred_check_branch
      %16 = sbr.rel (0) target = $region5
    $region4: #{tpu_custom_call.1} parent=1 // pred_region
      _
    $region5: #{tpu_custom_call.1} parent=1 // pred_fallthru
      _
    // Predicated region
    $region6: #{tpu_custom_call.1} parent=1 // pred_check
      _
    $region7: #{tpu_custom_call.1} parent=1 // pred_check_branch
      %18 = sbr.rel (0) target = $region9
    $region8: #{tpu_custom_call.1} parent=1 // pred_region
      _
    $region9: #{tpu_custom_call.1} parent=1 // pred_fallthru
      _
    // Predicated region
    $region10: #{tpu_custom_call.1} parent=1 // pred_check
      _
    $region11: #{tpu_custom_call.1} parent=1 // pred_check_branch
      %20 = sbr.rel (0) target = $region13
    $region12: #{tpu_custom_call.1} parent=1 // pred_region
      %s22 = ssub.s32 128, 128
      %23 = vsyncadd [#allocation3], %s22
      %s24 = sshll.u32 [#allocation2], 4
      %s25 = int_to_ptr.vmem [resolvable:$true] %s24
      %30 = dma.hbm_to_vmem [thread:$0]  %s2, 128, %s25, [#allocation3], 64, 64, 4
    $region13: #{tpu_custom_call.1} parent=1 // pred_fallthru
      _
    // Predicated region
    $region14: #{tpu_custom_call.1} parent=1 // pred_check
      _
    $region15: #{tpu_custom_call.1} parent=1 // pred_check_branch
      %32 = sbr.rel (0) target = $region17
    $region16: #{tpu_custom_call.1} parent=1 // pred_region
      %s34 = ssub.s32 64, 64
      %35 = vsyncadd [#allocation6], %s34
      %s37 = sshll.u32 [#allocation5], 4
      %s38 = int_to_ptr.vmem [resolvable:$true] %s37
      %40 = dma.hbm_to_vmem [thread:$0]  %s3, 64, %s38, [#allocation6]
    $region17: #{tpu_custom_call.1} parent=1 // pred_fallthru
      _
    // Predicated region
    $region18: #{tpu_custom_call.1} parent=1 // pred_check
      _
    $region19: #{tpu_custom_call.1} parent=1 // pred_check_branch
      %42 = sbr.rel (0) target = $region21
    $region20: #{tpu_custom_call.1} parent=1 // pred_region
      %s44 = ssub.s32 64, 64
      %45 = vsyncadd [#allocation6], %s44
      %s47 = sshll.u32 [#allocation7], 4
      %s48 = int_to_ptr.vmem [resolvable:$true] %s47
      %50 = dma.hbm_to_vmem [thread:$0]  %s4, 64, %s48, [#allocation6]
    $region21: #{tpu_custom_call.1} parent=1 // pred_fallthru
      _
    // Predicated region
    $region22: #{tpu_custom_call.1} parent=1 // pred_check
      _
    $region23: #{tpu_custom_call.1} parent=1 // pred_check_branch
      %52 = sbr.rel (0) target = $region25
    $region24: #{tpu_custom_call.1} parent=1 // pred_region
      _
    $region25: #{tpu_custom_call.1} parent=1 // pred_fallthru
      _
    // Predicated region
    $region26: #{tpu_custom_call.1} parent=1 // pred_check
      _
    $region27: #{tpu_custom_call.1} parent=1 // pred_check_branch
      %54 = sbr.rel (0) target = $region29
    $region28: #{tpu_custom_call.1} parent=1 // pred_region
      _
    $region29: #{tpu_custom_call.1} parent=1 // pred_fallthru
      _
    // Predicated region
    $region30: #{tpu_custom_call.1} parent=1 // pred_check
      _
    $region31: #{tpu_custom_call.1} parent=1 // pred_check_branch
      %56 = sbr.rel (0) target = $region33
    $region32: #{tpu_custom_call.1} parent=1 // pred_region
      %57 = dma.done [#allocation3], 128
    $region33: #{tpu_custom_call.1} parent=1 // pred_fallthru
      _
    // Predicated region
    $region34: #{tpu_custom_call.1} parent=1 // pred_check
      _
    $region35: #{tpu_custom_call.1} parent=1 // pred_check_branch
      %59 = sbr.rel (0) target = $region37
    $region36: #{tpu_custom_call.1} parent=1 // pred_region
      %60 = dma.done [#allocation6], 64
    $region37: #{tpu_custom_call.1} parent=1 // pred_fallthru
      _
    // Predicated region
    $region38: #{tpu_custom_call.1} parent=1 // pred_check
      _
    $region39: #{tpu_custom_call.1} parent=1 // pred_check_branch
      %62 = sbr.rel (0) target = $region41
    $region40: #{tpu_custom_call.1} parent=1 // pred_region
      %63 = dma.done [#allocation6], 64
    $region41: #{tpu_custom_call.1} parent=1 // pred_fallthru
      _
    %v65 = vld [vmem:[%s0] sm:$0xff]
    %v66 = vpack.c.bf16 %v65, %v65
    %v67 = vld [vmem:[#allocation2] sm:$0xf]
    %v68 = vld [vmem:[#allocation2 + $0x4] sm:$0xf]
    %v69 = vld [vmem:[%s1] sm:$0xff]
    %v70 = vpack.c.bf16 %v69, %v69
    %v71 = vld [vmem:[#allocation5] sm:$0xf]
    %vm72 = vcmask 64512
    %v74 = vsel %vm72, %v70, 0
    %vm76 = vcmask 1043456
    %v78 = vsel %vm76, %v71, 0
    %80 = vmatprep.subr.bf16.mxu0 0
    %81 = vmatpush1.bf16.msra.mxu0 %v78
    %82 = vmatprep.subr.bf16.mxu0 0
    %83 = vmatpush1.bf16.msra.mxu0 0
    %84 = vmatprep.subr.bf16.mxu0 0
    %85 = vmatpush1.bf16.msra.mxu0 0
    %86 = vmatprep.subr.bf16.mxu0 0
    %87 = vmatpush1.bf16.msra.mxu0 0
    %88 = vmatprep.subr.bf16.mxu0 0
    %89 = vmatpush1.bf16.msra.mxu0 0
    %90 = vmatprep.subr.bf16.mxu0 0
    %91 = vmatpush1.bf16.msra.mxu0 0
    %92 = vmatprep.subr.bf16.mxu0 0
    %93 = vmatpush1.bf16.msra.mxu0 0
    %94 = vmatprep.subr.bf16.mxu0 0
    %95 = vmatpush1.bf16.msra.mxu0 0
    %96 = vmatprep.subr.bf16.mxu0 0
    %97 = vmatpush1.bf16.msra.mxu0 0
    %98 = vmatprep.subr.bf16.mxu0 0
    %99 = vmatpush1.bf16.msra.mxu0 0
    %100 = vmatprep.subr.bf16.mxu0 0
    %101 = vmatpush1.bf16.msra.mxu0 0
    %102 = vmatprep.subr.bf16.mxu0 0
    %103 = vmatpush1.bf16.msra.mxu0 0
    %104 = vmatprep.subr.bf16.mxu0 0
    %105 = vmatpush1.bf16.msra.mxu0 0
    %106 = vmatprep.subr.bf16.mxu0 0
    %107 = vmatpush1.bf16.msra.mxu0 0
    %108 = vmatprep.subr.bf16.mxu0 0
    %109 = vmatpush1.bf16.msra.mxu0 0
    %110 = vmatprep.subr.bf16.mxu0 0
    %111 = vmatpush1.bf16.msra.mxu0 0
    %112 = vmatprep.mubr.bf16.mxu0 0
    %113 = vmatmul.mubr.bf16.gmra.mrb[0].mxu0 %v74
    %v114 = vpop.f32.mrb[0].mxu0
    %v115 = vadd.f32 0.0, %v114
    %v116 = vpop.f32.mrb[0].mxu0
    %v117 = vpop.f32.mrb[0].mxu0
    %v118 = vpop.f32.mrb[0].mxu0
    %119 = vdwg.mxu0
    %v122 = vunpack.c.l.b16 %v67
    %v123 = vunpack.c.l.b16 %v68
    %v124 = vpack.c.b16 %v123, %v122
    %vm126 = vcmask 130048
    %v128 = vsel %vm126, %v66, 0
    %130 = vmatprep.subr.bf16.mxu0 0
    %131 = vmatpush1.bf16.msra.mxu0 %v124
    %132 = vmatprep.subr.bf16.mxu0 0
    %133 = vmatpush1.bf16.msra.mxu0 0
    %134 = vmatprep.subr.bf16.mxu0 0
    %135 = vmatpush1.bf16.msra.mxu0 0
    %136 = vmatprep.subr.bf16.mxu0 0
    %137 = vmatpush1.bf16.msra.mxu0 0
    %138 = vmatprep.subr.bf16.mxu0 0
    %139 = vmatpush1.bf16.msra.mxu0 0
    %140 = vmatprep.subr.bf16.mxu0 0
    %141 = vmatpush1.bf16.msra.mxu0 0
    %142 = vmatprep.subr.bf16.mxu0 0
    %143 = vmatpush1.bf16.msra.mxu0 0
    %144 = vmatprep.subr.bf16.mxu0 0
    %145 = vmatpush1.bf16.msra.mxu0 0
    %146 = vmatprep.subr.bf16.mxu0 0
    %147 = vmatpush1.bf16.msra.mxu0 0
    %148 = vmatprep.subr.bf16.mxu0 0
    %149 = vmatpush1.bf16.msra.mxu0 0
    %150 = vmatprep.subr.bf16.mxu0 0
    %151 = vmatpush1.bf16.msra.mxu0 0
    %152 = vmatprep.subr.bf16.mxu0 0
    %153 = vmatpush1.bf16.msra.mxu0 0
    %154 = vmatprep.subr.bf16.mxu0 0
    %155 = vmatpush1.bf16.msra.mxu0 0
    %156 = vmatprep.subr.bf16.mxu0 0
    %157 = vmatpush1.bf16.msra.mxu0 0
    %158 = vmatprep.subr.bf16.mxu0 0
    %159 = vmatpush1.bf16.msra.mxu0 0
    %160 = vmatprep.subr.bf16.mxu0 0
    %161 = vmatpush1.bf16.msra.mxu0 0
    %162 = vmatprep.mubr.bf16.mxu0 0
    %163 = vmatmul.mubr.bf16.gmra.mrb[0].mxu0 %v128
    %v164 = vpop.f32.mrb[0].mxu0
    %v165 = vadd.f32 %v115, %v164
    %v166 = vpop.f32.mrb[0].mxu0
    %v167 = vpop.f32.mrb[0].mxu0
    %v168 = vpop.f32.mrb[0].mxu0
    %169 = vdwg.mxu0
    %v170 = vld [vmem:[#allocation7] sm:$0x1]
    %v171 = vlaneseq
    %v172 = vshrl.u32 %v171, 7
    %v173 = vsub.s32 0, %v172
    %v174 = vrot.slane %v170, %v173
    %v175 = vadd.f32 %v165, %v174
    %v176 = vmax.f32 %v175, 0.0
    %v177 = vpack.c.bf16 %v176, %v176
    %v178 = vld [vmem:[%s5] sm:$0xf]
    %v179 = vld [vmem:[%s5 + $0x4] sm:$0xf]
    %v180 = vld [vmem:[%s5 + $0x8] sm:$0xf]
    %v181 = vld [vmem:[%s5 + $0xc] sm:$0xf]
    %v182 = vld [vmem:[%s5 + $0x10] sm:$0xf]
    %v183 = vld [vmem:[%s5 + $0x14] sm:$0xf]
    %v184 = vld [vmem:[%s5 + $0x18] sm:$0xf]
    %v185 = vld [vmem:[%s5 + $0x1c] sm:$0xf]
    %v186 = vld [vmem:[#allocation7 + $0x1] sm:$0x1]
    %v187 = vlaneseq
    %v188 = vshrl.u32 %v187, 7
    %v189 = vsub.s32 0, %v188
    %v190 = vrot.slane %v186, %v189
    %v199 = vunpack.c.l.b16 %v178
    %v200 = vunpack.c.l.b16 %v179
    %v201 = vunpack.c.l.b16 %v180
    %v202 = vunpack.c.l.b16 %v181
    %v203 = vunpack.c.l.b16 %v182
    %v204 = vunpack.c.l.b16 %v183
    %v205 = vunpack.c.l.b16 %v184
    %v206 = vunpack.c.l.b16 %v185
    %v207 = vpack.c.b16 %v200, %v199
    %v208 = vpack.c.b16 %v202, %v201
    %v209 = vpack.c.b16 %v204, %v203
    %v210 = vpack.c.b16 %v206, %v205
    %vm215 = vcmask 523264
    %v217 = vsel %vm215, %v177, 0
    %219 = vmatprep.subr.bf16.mxu0 0
    %220 = vmatpush1.bf16.msra.mxu0 %v207
    %221 = vmatprep.subr.bf16.mxu0 0
    %222 = vmatpush1.bf16.msra.mxu0 %v208
    %223 = vmatprep.subr.bf16.mxu0 0
    %224 = vmatpush1.bf16.msra.mxu0 %v209
    %225 = vmatprep.subr.bf16.mxu0 0
    %226 = vmatpush1.bf16.msra.mxu0 %v210
    %227 = vmatprep.subr.bf16.mxu0 0
    %228 = vmatpush1.bf16.msra.mxu0 0
    %229 = vmatprep.subr.bf16.mxu0 0
    %230 = vmatpush1.bf16.msra.mxu0 0
    %231 = vmatprep.subr.bf16.mxu0 0
    %232 = vmatpush1.bf16.msra.mxu0 0
    %233 = vmatprep.subr.bf16.mxu0 0
    %234 = vmatpush1.bf16.msra.mxu0 0
    %235 = vmatprep.subr.bf16.mxu0 0
    %236 = vmatpush1.bf16.msra.mxu0 0
    %237 = vmatprep.subr.bf16.mxu0 0
    %238 = vmatpush1.bf16.msra.mxu0 0
    %239 = vmatprep.subr.bf16.mxu0 0
    %240 = vmatpush1.bf16.msra.mxu0 0
    %241 = vmatprep.subr.bf16.mxu0 0
    %242 = vmatpush1.bf16.msra.mxu0 0
    %243 = vmatprep.subr.bf16.mxu0 0
    %244 = vmatpush1.bf16.msra.mxu0 0
    %245 = vmatprep.subr.bf16.mxu0 0
    %246 = vmatpush1.bf16.msra.mxu0 0
    %247 = vmatprep.subr.bf16.mxu0 0
    %248 = vmatpush1.bf16.msra.mxu0 0
    %249 = vmatprep.subr.bf16.mxu0 0
    %250 = vmatpush1.bf16.msra.mxu0 0
    %251 = vmatprep.mubr.bf16.mxu0 0
    %252 = vmatmul.mubr.bf16.gmra.mrb[0].mxu0 %v217
    %v253 = vpop.f32.mrb[0].mxu0
    %v254 = vadd.f32 %v190, %v253
    %v255 = vpop.f32.mrb[0].mxu0
    %v256 = vpop.f32.mrb[0].mxu0
    %v257 = vpop.f32.mrb[0].mxu0
    %258 = vdwg.mxu0
    %v259 = vmax.f32 %v254, 0.0
    %v260 = vpack.c.bf16 %v259, %v259
    %v261 = vld [vmem:[%s6] sm:$0xf]
    %v262 = vld [vmem:[%s6 + $0x4] sm:$0xf]
    %v263 = vld [vmem:[%s6 + $0x8] sm:$0xf]
    %v264 = vld [vmem:[%s6 + $0xc] sm:$0xf]
    %v265 = vld [vmem:[%s6 + $0x10] sm:$0xf]
    %v266 = vld [vmem:[%s6 + $0x14] sm:$0xf]
    %v267 = vld [vmem:[%s6 + $0x18] sm:$0xf]
    %v268 = vld [vmem:[%s6 + $0x1c] sm:$0xf]
    %v269 = vld [vmem:[#allocation7 + $0x2] sm:$0x1]
    %v270 = vlaneseq
    %v271 = vshrl.u32 %v270, 7
    %v272 = vsub.s32 0, %v271
    %v273 = vrot.slane %v269, %v272
    %v282 = vunpack.c.l.b16 %v261
    %v283 = vunpack.c.l.b16 %v262
    %v284 = vunpack.c.l.b16 %v263
    %v285 = vunpack.c.l.b16 %v264
    %v286 = vunpack.c.l.b16 %v265
    %v287 = vunpack.c.l.b16 %v266
    %v288 = vunpack.c.l.b16 %v267
    %v289 = vunpack.c.l.b16 %v268
    %v290 = vpack.c.b16 %v283, %v282
    %v291 = vpack.c.b16 %v285, %v284
    %v292 = vpack.c.b16 %v287, %v286
    %v293 = vpack.c.b16 %v289, %v288
    %v299 = vsel %vm215, %v260, 0
    %301 = vmatprep.subr.bf16.mxu0 0
    %302 = vmatpush1.bf16.msra.mxu0 %v290
    %303 = vmatprep.subr.bf16.mxu0 0
    %304 = vmatpush1.bf16.msra.mxu0 %v291
    %305 = vmatprep.subr.bf16.mxu0 0
    %306 = vmatpush1.bf16.msra.mxu0 %v292
    %307 = vmatprep.subr.bf16.mxu0 0
    %308 = vmatpush1.bf16.msra.mxu0 %v293
    %309 = vmatprep.subr.bf16.mxu0 0
    %310 = vmatpush1.bf16.msra.mxu0 0
    %311 = vmatprep.subr.bf16.mxu0 0
    %312 = vmatpush1.bf16.msra.mxu0 0
    %313 = vmatprep.subr.bf16.mxu0 0
    %314 = vmatpush1.bf16.msra.mxu0 0
    %315 = vmatprep.subr.bf16.mxu0 0
    %316 = vmatpush1.bf16.msra.mxu0 0
    %317 = vmatprep.subr.bf16.mxu0 0
    %318 = vmatpush1.bf16.msra.mxu0 0
    %319 = vmatprep.subr.bf16.mxu0 0
    %320 = vmatpush1.bf16.msra.mxu0 0
    %321 = vmatprep.subr.bf16.mxu0 0
    %322 = vmatpush1.bf16.msra.mxu0 0
    %323 = vmatprep.subr.bf16.mxu0 0
    %324 = vmatpush1.bf16.msra.mxu0 0
    %325 = vmatprep.subr.bf16.mxu0 0
    %326 = vmatpush1.bf16.msra.mxu0 0
    %327 = vmatprep.subr.bf16.mxu0 0
    %328 = vmatpush1.bf16.msra.mxu0 0
    %329 = vmatprep.subr.bf16.mxu0 0
    %330 = vmatpush1.bf16.msra.mxu0 0
    %331 = vmatprep.subr.bf16.mxu0 0
    %332 = vmatpush1.bf16.msra.mxu0 0
    %333 = vmatprep.mubr.bf16.mxu0 0
    %334 = vmatmul.mubr.bf16.gmra.mrb[0].mxu0 %v299
    %v335 = vpop.f32.mrb[0].mxu0
    %v336 = vadd.f32 %v273, %v335
    %v337 = vpop.f32.mrb[0].mxu0
    %v338 = vpop.f32.mrb[0].mxu0
    %v339 = vpop.f32.mrb[0].mxu0
    %340 = vdwg.mxu0
    %341 = vxpose.xlu0.b32.start [1/16] %v336, 128
    %342 = vxpose.xlu0.b32.cont [2/16] 0.0, 128
    %343 = vxpose.xlu0.b32.cont [3/16] 0.0, 128
    %344 = vxpose.xlu0.b32.cont [4/16] 0.0, 128
    %345 = vxpose.xlu0.b32.cont [5/16] 0.0, 128
    %346 = vxpose.xlu0.b32.cont [6/16] 0.0, 128
    %347 = vxpose.xlu0.b32.cont [7/16] 0.0, 128
    %348 = vxpose.xlu0.b32.cont [8/16] 0.0, 128
    %349 = vxpose.xlu0.b32.cont [9/16] 0.0, 128
    %350 = vxpose.xlu0.b32.cont [10/16] 0.0, 128
    %351 = vxpose.xlu0.b32.cont [11/16] 0.0, 128
    %352 = vxpose.xlu0.b32.cont [12/16] 0.0, 128
    %353 = vxpose.xlu0.b32.cont [13/16] 0.0, 128
    %354 = vxpose.xlu0.b32.cont [14/16] 0.0, 128
    %355 = vxpose.xlu0.b32.cont [15/16] 0.0, 128
    %356 = vxpose.xlu0.b32.end [16/16] 0.0, 128
    %v357 = vpop.trf.xlu0
    %v358 = vpop.trf.xlu0
    %v359 = vpop.trf.xlu0
    %v360 = vpop.trf.xlu0
    %v361 = vpop.trf.xlu0
    %v362 = vpop.trf.xlu0
    %v363 = vpop.trf.xlu0
    %v364 = vpop.trf.xlu0
    %v365 = vpop.trf.xlu0
    %v366 = vpop.trf.xlu0
    %v367 = vpop.trf.xlu0
    %v368 = vpop.trf.xlu0
    %v369 = vpop.trf.xlu0
    %v370 = vpop.trf.xlu0
    %v371 = vpop.trf.xlu0
    %v372 = vpop.trf.xlu0
    %vm373 = vcmask 58368
    %374 = vst.msk [vmem:[#allocation8] sm:$0x3] %vm373, %v357
    // Predicated region
    $region42: #{tpu_custom_call.1} parent=1 // pred_check
      _
    $region43: #{tpu_custom_call.1} parent=1 // pred_check_branch
      %376 = sbr.rel (0) target = $region45
    $region44: #{tpu_custom_call.1} parent=1 // pred_region
      %s378 = ssub.s32 32, 32
      %379 = vsyncadd [#allocation4], %s378
      %s381 = sshll.u32 [#allocation8], 4
      %s382 = int_to_ptr.vmem [resolvable:$true] %s381
      %384 = dma.vmem_to_hbm [thread:$0]  %s382, 32, %s7, [#allocation4]
    $region45: #{tpu_custom_call.1} parent=1 // pred_fallthru
      _
    // Predicated region
    $region46: #{tpu_custom_call.1} parent=1 // pred_check
      _
    $region47: #{tpu_custom_call.1} parent=1 // pred_check_branch
      %386 = sbr.rel (0) target = $region49
    $region48: #{tpu_custom_call.1} parent=1 // pred_region
      %387 = dma.done [#allocation4], 32
    $region49: #{tpu_custom_call.1} parent=1 // pred_fallthru
      _
    %388 = vsyncpa [#allocation3], 1
    %389 = vsyncpa [#allocation6], 1
    %390 = vsyncpa [#allocation4], 1

</llo_original>
